<compile_context>
chip_gen: v7x
topology: tpu7x:2x2x1
jax: 0.10.0
libtpu: 0.0.40
codegen_flags: <defaults>
</compile_context>

<pallas_src>
import functools

import jax
import jax.numpy as jnp
from jax.experimental import pallas as pl
from jax.experimental.pallas import tpu as pltpu


def _weighted_mse_kernel(x_ref, y_ref, o_ref, acc_ref, *, scale):
    """Per core: accumulate sum((x-y)^2) into a lane-resident (8,128) slab.

    Grid = (core_split, tiles_per_core).  Finalize writes the scaled partial
    slab; the wrapper sums the per-core slabs (one tiny XLA reduce).
    """
    i = pl.program_id(1)

    @pl.when(i == 0)
    def _():
        acc_ref[...] = jnp.zeros_like(acc_ref)

    d = x_ref[...].astype(jnp.float32) - y_ref[...].astype(jnp.float32)
    sq = d * d
    # Fold the (tile_rows, 128) tile into the (8, 128) accumulator.  The
    # reshape only splits the major dim (native (8,128) sub-tiles stay
    # intact), so this lowers to plain vector adds that hide under the DMA.
    acc_ref[...] += jnp.sum(sq.reshape(sq.shape[0] // 8, 8, sq.shape[1]), axis=0)

    @pl.when(i == pl.num_programs(1) - 1)
    def _():
        o_ref[...] = acc_ref[...] * jnp.float32(scale)


def weighted_mse_loss(pred, target, weight, *,
                      max_tile_rows=1024,
                      n_core_splits=2,
                      min_kernel_elems=32768,
                      force_kernel=False):
    """weight * mean((pred - target)^2); reduction done in a Pallas kernel."""
    assert pred.shape == target.shape, (pred.shape, target.shape)
    n_elem = int(pred.size)
    if n_elem == 0:
        return jnp.float32(0.0)
    scale = float(weight) / float(n_elem)

    # Tiny tensors: fixed pallas_call launch/pipeline overhead dominates;
    # plain XLA fusion is faster there.
    if (not force_kernel) and n_elem < min_kernel_elems:
        d = pred.astype(jnp.float32) - target.astype(jnp.float32)
        return jnp.float32(scale) * jnp.sum(d * d)

    lanes = 128
    rows = -(-n_elem // lanes)                       # cdiv
    per_core_rows = -(-rows // n_core_splits)

    # Largest tile (<= max_tile_rows rows) that isn't grossly bigger than the
    # per-core share; floor of 32 rows keeps sublane tiling safe for any dtype.
    tile_rows = max_tile_rows
    while tile_rows > 32 and tile_rows > per_core_rows:
        tile_rows //= 2

    chunk_rows = n_core_splits * tile_rows
    padded_rows = -(-rows // chunk_rows) * chunk_rows
    padded_elems = padded_rows * lanes

    x = pred.reshape(-1)
    y = target.reshape(-1)
    if padded_elems != n_elem:
        pad = padded_elems - n_elem
        # Pad BOTH operands with zeros so the padded region's diff is exactly
        # zero and contributes nothing to the sum (scale uses original n_elem).
        x = jnp.pad(x, (0, pad))
        y = jnp.pad(y, (0, pad))
    x2d = x.reshape(padded_rows, lanes)
    y2d = y.reshape(padded_rows, lanes)

    tiles_per_core = padded_rows // chunk_rows

    kernel = functools.partial(_weighted_mse_kernel, scale=scale)

    out_rows = n_core_splits * 8
    bytes_accessed = (x2d.size * x2d.dtype.itemsize
                      + y2d.size * y2d.dtype.itemsize
                      + out_rows * lanes * 4)

    partials = pl.pallas_call(
        kernel,
        out_shape=jax.ShapeDtypeStruct((out_rows, lanes), jnp.float32),
        grid_spec=pltpu.PrefetchScalarGridSpec(
            num_scalar_prefetch=0,
            # Leading "parallel" axis shards the reduction across TensorCores
            # on v7x; it is a harmless sequential split on v5e/v6e.
            grid=(n_core_splits, tiles_per_core),
            in_specs=[
                pl.BlockSpec((tile_rows, lanes),
                             lambda c, i: (c * tiles_per_core + i, 0)),
                pl.BlockSpec((tile_rows, lanes),
                             lambda c, i: (c * tiles_per_core + i, 0)),
            ],
            out_specs=pl.BlockSpec((8, lanes), lambda c, i: (c, 0)),
            scratch_shapes=[pltpu.VMEM((8, lanes), jnp.float32)],
        ),
        compiler_params=pltpu.CompilerParams(
            dimension_semantics=("parallel", "arbitrary"),
        ),
        cost_estimate=pl.CostEstimate(
            flops=3 * padded_elems,
            transcendentals=0,
            bytes_accessed=int(bytes_accessed),
        ),
    )(x2d, y2d)

    # One tiny cross-core / cross-lane reduce (16x128 elements) in plain JAX.
    return jnp.sum(partials)


class BaseLoss:
    """JAX/Pallas port of BaseLoss.forward semantics."""

    def __init__(self, weight=1.0, input_dict=None, loss_func=None,
                 force_kernel=False):
        self.weight = float(weight)
        self.input_dict = input_dict if input_dict is not None else {"input": "input"}
        if loss_func is None:
            # Built-in Pallas MSE: the `self.weight * loss` step of forward()
            # is fused into the kernel finalize.
            self._weight_fused = True
            loss_func = lambda pred, target: weighted_mse_loss(
                pred, target, self.weight, force_kernel=force_kernel)
        else:
            self._weight_fused = False
        self.loss_func = loss_func
        # TODO(synk): `self.writer = writer` in the original refers to an
        # external global logger; no Pallas/JAX equivalent, omitted.

    def forward(self, inputs):
        actual_inputs = {k: inputs[v] for k, v in self.input_dict.items()}
        loss = self.loss_func(**actual_inputs)
        if isinstance(loss, dict):
            # dict-of-losses path: scale each entry by weight (plain-JAX glue).
            return {k: v * self.weight for k, v in loss.items()}
        if self._weight_fused:
            return loss  # weight already applied inside the kernel
        return self.weight * loss

    __call__ = forward


if __name__ == "__main__":
    key = jax.random.PRNGKey(0)
    k1, k2, k3, k4, k5, k6 = jax.random.split(key, 6)

    # --- 1) Main demo through BaseLoss: NCHW (2, 4, 16, 16), weight fused ---
    pred = jax.random.normal(k1, (2, 4, 16, 16), dtype=jnp.float32)
    target = jax.random.normal(k2, (2, 4, 16, 16), dtype=jnp.float32)
    loss_mod = BaseLoss(
        weight=0.5,
        input_dict={"pred": "model_output", "target": "ground_truth"},
        force_kernel=True,  # small demo: force the Pallas path
    )
    inputs = {"model_output": pred, "ground_truth": target}
    loss = jax.block_until_ready(loss_mod(inputs))
    ref = 0.5 * jnp.mean((pred - target) ** 2)
    assert jnp.allclose(loss, ref, rtol=1e-5, atol=1e-6), (loss, ref)

    # --- 2) Non-divisible shape: exercises the zero-padding path ------------
    p2 = jax.random.normal(k3, (2, 3, 17, 19), dtype=jnp.float32)
    t2 = jax.random.normal(k4, (2, 3, 17, 19), dtype=jnp.float32)
    l2 = jax.block_until_ready(weighted_mse_loss(p2, t2, 0.25, force_kernel=True))
    r2 = 0.25 * jnp.mean((p2 - t2) ** 2)
    assert jnp.allclose(l2, r2, rtol=1e-5, atol=1e-6), (l2, r2)

    # --- 3) Bigger input: exercises the large-tile + 2-way core split path --
    p3 = jax.random.normal(k5, (4, 8, 64, 64), dtype=jnp.float32)
    t3 = jax.random.normal(k6, (4, 8, 64, 64), dtype=jnp.float32)
    l3 = jax.block_until_ready(weighted_mse_loss(p3, t3, 2.0))
    r3 = 2.0 * jnp.mean((p3 - t3) ** 2)
    assert jnp.allclose(l3, r3, rtol=1e-4, atol=1e-6), (l3, r3)

    # --- 4) dict-of-losses path of forward() (plain-JAX glue semantics) -----
    dict_mod = BaseLoss(
        weight=0.5,
        input_dict={"pred": "model_output", "target": "ground_truth"},
        loss_func=lambda pred, target: {"l2": jnp.mean((pred - target) ** 2)},
    )
    dloss = dict_mod(inputs)
    assert jnp.allclose(dloss["l2"], ref, rtol=1e-5, atol=1e-6)

    print("KERNEL_OK")
</pallas_src>

<mosaic_0001>
module attributes {stable_mosaic.version = 11 : i64} {
  func.func @_weighted_mse_kernel(%arg0: i32, %arg1: i32, %arg2: memref<32x128xf32, #tpu.memory_space<vmem>>, %arg3: memref<32x128xf32, #tpu.memory_space<vmem>>, %arg4: memref<8x128xf32, #tpu.memory_space<vmem>>, %arg5: memref<8x128xf32, #tpu.memory_space<vmem>>) attributes {dimension_semantics = [#tpu.dimension_semantics<parallel>, #tpu.dimension_semantics<arbitrary>], iteration_bounds = array<i64: 2, 1>, scalar_prefetch = 0 : i64, scratch_operands = 1 : i64, tpu.core_type = #tpu.core_type<tc>, window_params = [{transform_indices = @transform_0, window_bounds = array<i64: 32, 128>}, {transform_indices = @transform_1, window_bounds = array<i64: 32, 128>}, {transform_indices = @transform_2, window_bounds = array<i64: 8, 128>}]} {
    %c0_i32 = arith.constant 0 : i32
    %0 = arith.cmpi eq, %arg1, %c0_i32 : i32
    %1 = arith.extui %0 : i1 to i32
    %c0_i32_0 = arith.constant 0 : i32
    %2 = arith.cmpi ne, %1, %c0_i32_0 : i32
    scf.if %2 {
      %cst_10 = arith.constant 0.000000e+00 : f32
      %15 = vector.broadcast %cst_10 : f32 to vector<8x128xf32>
      %c0_11 = arith.constant 0 : index
      %c0_12 = arith.constant 0 : index
      %16 = vector.load %arg5[%c0_11, %c0_12] : memref<8x128xf32, #tpu.memory_space<vmem>>, vector<8x128xf32>
      tpu.vector_store %arg5[%c0_11, %c0_12], %15 {strides = array<i32>} : memref<8x128xf32, #tpu.memory_space<vmem>>, vector<8x128xf32>,
    } else {
    }
    %c0 = arith.constant 0 : index
    %c0_1 = arith.constant 0 : index
    %3 = vector.load %arg2[%c0, %c0_1] : memref<32x128xf32, #tpu.memory_space<vmem>>, vector<32x128xf32>
    %c0_2 = arith.constant 0 : index
    %c0_3 = arith.constant 0 : index
    %4 = vector.load %arg3[%c0_2, %c0_3] : memref<32x128xf32, #tpu.memory_space<vmem>>, vector<32x128xf32>
    %5 = arith.subf %3, %4 : vector<32x128xf32>
    %6 = arith.mulf %5, %5 : vector<32x128xf32>
    %c0_4 = arith.constant 0 : index
    %c0_5 = arith.constant 0 : index
    %7 = vector.load %arg5[%c0_4, %c0_5] : memref<8x128xf32, #tpu.memory_space<vmem>>, vector<8x128xf32>
    %8 = vector.shape_cast %6 : vector<32x128xf32> to vector<4x8x128xf32>
    %cst = arith.constant dense<0.000000e+00> : vector<8x128xf32>
    %9 = vector.multi_reduction <add>, %8, %cst [0] : vector<4x8x128xf32> to vector<8x128xf32>
    %10 = arith.addf %7, %9 : vector<8x128xf32>
    %c0_6 = arith.constant 0 : index
    %c0_7 = arith.constant 0 : index
    %11 = vector.load %arg5[%c0_6, %c0_7] : memref<8x128xf32, #tpu.memory_space<vmem>>, vector<8x128xf32>
    tpu.vector_store %arg5[%c0_6, %c0_7], %10 {strides = array<i32>} : memref<8x128xf32, #tpu.memory_space<vmem>>, vector<8x128xf32>,
    %c0_i32_8 = arith.constant 0 : i32
    %12 = arith.cmpi eq, %arg1, %c0_i32_8 : i32
    %13 = arith.extui %12 : i1 to i32
    %c0_i32_9 = arith.constant 0 : i32
    %14 = arith.cmpi ne, %13, %c0_i32_9 : i32
    scf.if %14 {
      %c0_10 = arith.constant 0 : index
      %c0_11 = arith.constant 0 : index
      %15 = vector.load %arg5[%c0_10, %c0_11] : memref<8x128xf32, #tpu.memory_space<vmem>>, vector<8x128xf32>
      %cst_12 = arith.constant 2.44140625E-4 : f32
      %16 = vector.broadcast %cst_12 : f32 to vector<8x128xf32>
      %17 = arith.mulf %15, %16 : vector<8x128xf32>
      %c0_13 = arith.constant 0 : index
      %c0_14 = arith.constant 0 : index
      %18 = vector.load %arg4[%c0_13, %c0_14] : memref<8x128xf32, #tpu.memory_space<vmem>>, vector<8x128xf32>
      tpu.vector_store %arg4[%c0_13, %c0_14], %17 {strides = array<i32>} : memref<8x128xf32, #tpu.memory_space<vmem>>, vector<8x128xf32>,
    } else {
    }
    return
  }
  func.func @transform_0(%arg0: i32, %arg1: i32) -> (i32, i32) {
    %c1_i32 = arith.constant 1 : i32
    %0 = arith.muli %arg0, %c1_i32 : i32
    %1 = arith.addi %0, %arg1 : i32
    %c0_i32 = arith.constant 0 : i32
    %c0_i32_0 = arith.constant 0 : i32
    return %1, %c0_i32 : i32, i32
  }
  func.func @transform_1(%arg0: i32, %arg1: i32) -> (i32, i32) {
    %c1_i32 = arith.constant 1 : i32
    %0 = arith.muli %arg0, %c1_i32 : i32
    %1 = arith.addi %0, %arg1 : i32
    %c0_i32 = arith.constant 0 : i32
    %c0_i32_0 = arith.constant 0 : i32
    return %1, %c0_i32 : i32, i32
  }
  func.func @transform_2(%arg0: i32, %arg1: i32) -> (i32, i32) {
    %c0_i32 = arith.constant 0 : i32
    %c0_i32_0 = arith.constant 0 : i32
    return %arg0, %c0_i32 : i32, i32
  }
}

</mosaic_0001>

<llo_original>
// kernel: tpu_custom_call.1
$region0: #{tpu_custom_call.1}
  #allocation0 [shape = 'u32[]', space=smem, size = 0x4, offset = 0x4, fixed_abs, tag = 'smem constant byte address 0x4 - core index']
  #allocation1 [shape = 'u32[144,128]{1,0:T(1,128)}', space=vmem, size = 0x12000, scoped, tag = 'internal scratch']
  #allocation2 [shape = 'f32[8,128]{1,0:T(8,128)}', space=vmem, size = 0x1000, scoped, tag = 'scratch operand']
  %s0 = inlined_call_operand.hbm [shape: f32[64,128], index: 0, kind: input, shape index: {}]
  %s1 = inlined_call_operand.hbm [shape: f32[64,128], index: 1, kind: input, shape index: {}]
  %s2 = inlined_call_operand.hbm [shape: f32[16,128], index: 2, kind: output, shape index: {}]
  %s3 = sld [smem:[#allocation0]]
  $region57: #{tpu_custom_call.1} parent=0
    _
  %s5 = ssub.s32 1, %s3
  %s6 = scalar_select 0, %s5, %s3
  $region1: #{tpu_custom_call.1} parent=0
    #allocation3 [shape = 'u8[32768]{0}', space=vmem, size = 0x8000, scoped, tag = 'input window, operand 0']
    #allocation4 [shape = 's32[2]{0}', space=sflag, size = 0x8, scoped, tag = 'scoped memory for tpu_custom_call.1']
    #allocation5 [shape = 's32[2]{0}', space=sflag, size = 0x8, scoped, tag = 'scoped memory for tpu_custom_call.1']
    #allocation6 [shape = 'u8[32768]{0}', space=vmem, size = 0x8000, scoped, tag = 'input window, operand 1']
    #allocation7 [shape = 's32[2]{0}', space=sflag, size = 0x8, scoped, tag = 'scoped memory for tpu_custom_call.1']
    #allocation8 [shape = 'u8[8192]{0}', space=vmem, size = 0x2000, scoped, tag = 'output window, operand 0']
    %7 = vsyncpa [#allocation4], 0
    %s8 = scalar_lea.sflag [#allocation4], 1
    %9 = vsyncpa %s8, 0
    %10 = vsyncpa [#allocation7], 0
    %s11 = scalar_lea.sflag [#allocation7], 1
    %12 = vsyncpa %s11, 0
    %13 = vsyncpa [#allocation5], 0
    %s14 = scalar_lea.sflag [#allocation5], 1
    %15 = vsyncpa %s14, 0
    loop: start=0, step=1, limit=4
    $region2: #{tpu_custom_call.1} parent=1 // loop_pre_header
      _
    $region3: #{tpu_custom_call.1} parent=1 // loop_header
      %s17 = sphi 0, %s21
      %p18 = scmp.ge.s32.totalorder %s17, 4
      %s24 = sphi 0, %s36
      %s25 = sphi 0, %s32
      %s26 = sphi 0, %s24
      %s27 = sphi 0, %s25
      %s28 = sphi 0, %s26
      %s29 = sphi 0, %s27
      %s41 = sphi 0, %s43
      %s44 = sphi 0, %s41
      %s45 = sphi 0, %s44
      %s61 = sphi 0, %s45
      %s69 = sphi 0, %s71
      %s72 = sphi 0, %s69
      %s73 = sphi 0, %s72
      %s89 = sphi 0, %s73
      %s95 = sphi 0, %s97
      %s98 = sphi 0, %s95
      %s99 = sphi 0, %s98
      %s115 = sphi 0, %s99
    $region4: #{tpu_custom_call.1} parent=1 // loop_header_branch
      %20 = sbr.rel (%p18) target = $region8
    $region5: #{tpu_custom_call.1} parent=1 // loop_body
      %s22 = ssub.s32 %s17, 1
      %s23 = ssub.s32 %s17, 2
      %s30 = sadd.s32 1, %s25
      %p31 = scmp.ge.s32.totalorder %s30, 1
      %s32 = scalar_select %p31, 0, %s30
      %s33 = sadd.s32 1, %s24
      %s34 = scalar_select %p31, %s33, %s24
      %p35 = scmp.ge.s32.totalorder %s34, 2
      %s36 = scalar_select %p35, 0, %s34
      %s37 = sadd.s32 %s24, %s25
      %s38 = sadd.s32 %s36, %s32
      %s39 = ssub.s32 %s37, %s38
      %p40 = scmp.eq.s32.totalorder %s39, 0
      %s42 = sadd.s32 %s41, 1
      %s43 = scalar_select %p40, %s41, %s42
      %p46 = pneg %p40
      %p47 = scmp.eq.s32.totalorder %s17, 1
      %p48 = por %p46, %p47
      %p49 = scmp.ne.s32.totalorder %s41, %s44
      %p50 = scmp.eq.s32.totalorder %s17, 0
      %p51 = por %p49, %p50
      %p52 = scmp.ne.s32.totalorder %s41, %s44
      %p53 = scmp.eq.s32.totalorder %s22, 1
      %p54 = por %p52, %p53
      %p55 = scmp.ne.s32.totalorder %s44, %s45
      %p56 = scmp.eq.s32.totalorder %s22, 0
      %p57 = por %p55, %p56
      %p58 = scmp.ne.s32.totalorder %s44, %s45
      %p59 = scmp.eq.s32.totalorder %s23, 1
      %p60 = por %p58, %p59
      %p62 = scmp.ne.s32.totalorder %s45, %s61
      %p63 = scmp.eq.s32.totalorder %s23, 0
      %p64 = por %p62, %p63
      %s65 = sadd.s32 %s24, %s25
      %s66 = sadd.s32 %s36, %s32
      %s67 = ssub.s32 %s65, %s66
      %p68 = scmp.eq.s32.totalorder %s67, 0
      %s70 = sadd.s32 %s69, 1
      %s71 = scalar_select %p68, %s69, %s70
      %p74 = pneg %p68
      %p75 = scmp.eq.s32.totalorder %s17, 1
      %p76 = por %p74, %p75
      %p77 = scmp.ne.s32.totalorder %s69, %s72
      %p78 = scmp.eq.s32.totalorder %s17, 0
      %p79 = por %p77, %p78
      %p80 = scmp.ne.s32.totalorder %s69, %s72
      %p81 = scmp.eq.s32.totalorder %s22, 1
      %p82 = por %p80, %p81
      %p83 = scmp.ne.s32.totalorder %s72, %s73
      %p84 = scmp.eq.s32.totalorder %s22, 0
      %p85 = por %p83, %p84
      %p86 = scmp.ne.s32.totalorder %s72, %s73
      %p87 = scmp.eq.s32.totalorder %s23, 1
      %p88 = por %p86, %p87
      %p90 = scmp.ne.s32.totalorder %s73, %s89
      %p91 = scmp.eq.s32.totalorder %s23, 0
      %p92 = por %p90, %p91
      %s93 = ssub.s32 %s24, %s36
      %p94 = scmp.eq.s32.totalorder %s93, 0
      %s96 = sadd.s32 %s95, 1
      %s97 = scalar_select %p94, %s95, %s96
      %p100 = pneg %p94
      %p101 = scmp.eq.s32.totalorder %s17, 1
      %p102 = por %p100, %p101
      %p103 = scmp.ne.s32.totalorder %s95, %s98
      %p104 = scmp.eq.s32.totalorder %s17, 0
      %p105 = por %p103, %p104
      %p106 = scmp.ne.s32.totalorder %s95, %s98
      %p107 = scmp.eq.s32.totalorder %s22, 1
      %p108 = por %p106, %p107
      %p109 = scmp.ne.s32.totalorder %s98, %s99
      %p110 = scmp.eq.s32.totalorder %s22, 0
      %p111 = por %p109, %p110
      %p112 = scmp.ne.s32.totalorder %s98, %s99
      %p113 = scmp.eq.s32.totalorder %s23, 1
      %p114 = por %p112, %p113
      %p116 = scmp.ne.s32.totalorder %s99, %s115
      %p117 = scmp.eq.s32.totalorder %s23, 0
      %p118 = por %p116, %p117
      %p119 = scmp.le.s32.totalorder 1, %s17
      %p120 = scmp.lt.s32.totalorder %s17, 3
      %p121 = pnand %p119, %p120
      %p122 = pneg %p121
      // Predicated region
      $region9: #{tpu_custom_call.1} parent=5 // pred_check
        _
      $region10: #{tpu_custom_call.1} parent=5 // pred_check_branch
        %124 = sbr.rel (%p121) target = $region12
      $region11: #{tpu_custom_call.1} parent=5 // pred_region
        %s125 = ssub.s32 %s17, 1
      $region12: #{tpu_custom_call.1} parent=5 // pred_fallthru
        _
      %p126 = scmp.lt.s32.totalorder %s17, 2
      // Predicated region
      $region13: #{tpu_custom_call.1} parent=5 // pred_check
        %p127 = pneg %p126
      $region14: #{tpu_custom_call.1} parent=5 // pred_check_branch
        %129 = sbr.rel (%p127) target = $region16
      $region15: #{tpu_custom_call.1} parent=5 // pred_region
        // Predicated region
        $region17: #{tpu_custom_call.1} parent=15 // pred_check
          %p130 = pneg %p51
        $region18: #{tpu_custom_call.1} parent=15 // pred_check_branch
          %132 = sbr.rel (%p130) target = $region20
        $region19: #{tpu_custom_call.1} parent=15 // pred_region
          %s133 = sand.u32 %s41, 1
          %s134 = scalar_lea.sflag [#allocation4], %s133
          %s135 = sand.u32 %s41, 1
          %s136 = smul.addr %s135, 32
          %s137 = scalar_lea.vmem [#allocation3], %s136
          %s138 = sadd.s32 %s24, %s25
          %s139 = smul.u32 4, %s138
          %s141 = ssub.s32 512, 512
          %142 = vsyncadd %s134, %s141
          %s143 = smul.addr %s139, 128
          %s144 = scalar_lea.hbm %s0, %s143
          %s145 = sshll.u32 %s137, 4
          %s146 = int_to_ptr.vmem [resolvable:$true] %s145
          %151 = dma.hbm_to_vmem [thread:$0]  %s144, 512, %s146, %s134, 128, 128, 8
        $region20: #{tpu_custom_call.1} parent=15 // pred_fallthru
          _
        // Predicated region
        $region21: #{tpu_custom_call.1} parent=15 // pred_check
          %p152 = pneg %p79
        $region22: #{tpu_custom_call.1} parent=15 // pred_check_branch
          %154 = sbr.rel (%p152) target = $region24
        $region23: #{tpu_custom_call.1} parent=15 // pred_region
          %s155 = sand.u32 %s69, 1
          %s156 = scalar_lea.sflag [#allocation7], %s155
          %s157 = sand.u32 %s69, 1
          %s158 = smul.addr %s157, 32
          %s159 = scalar_lea.vmem [#allocation6], %s158
          %s160 = sadd.s32 %s24, %s25
          %s161 = smul.u32 4, %s160
          %s163 = ssub.s32 512, 512
          %164 = vsyncadd %s156, %s163
          %s165 = smul.addr %s161, 128
          %s166 = scalar_lea.hbm %s1, %s165
          %s167 = sshll.u32 %s159, 4
          %s168 = int_to_ptr.vmem [resolvable:$true] %s167
          %173 = dma.hbm_to_vmem [thread:$0]  %s166, 512, %s168, %s156, 128, 128, 8
        $region24: #{tpu_custom_call.1} parent=15 // pred_fallthru
          _
      $region16: #{tpu_custom_call.1} parent=5 // pred_fallthru
        _
      %p174 = scmp.le.s32.totalorder 1, %s17
      %p175 = scmp.lt.s32.totalorder %s17, 3
      %p176 = pnand %p174, %p175
      %p177 = pneg %p176
      // Predicated region
      $region25: #{tpu_custom_call.1} parent=5 // pred_check
        _
      $region26: #{tpu_custom_call.1} parent=5 // pred_check_branch
        %179 = sbr.rel (%p176) target = $region28
      $region27: #{tpu_custom_call.1} parent=5 // pred_region
        %s180 = ssub.s32 %s17, 1
        %s181 = sand.u32 %s44, 1
        %s182 = scalar_lea.sflag [#allocation4], %s181
        %s183 = sand.u32 %s44, 1
        %s184 = smul.addr %s183, 32
        %s185 = scalar_lea.vmem [#allocation3], %s184
        // Predicated region
        $region29: #{tpu_custom_call.1} parent=27 // pred_check
          %p186 = pneg %p57
        $region30: #{tpu_custom_call.1} parent=27 // pred_check_branch
          %188 = sbr.rel (%p186) target = $region32
        $region31: #{tpu_custom_call.1} parent=27 // pred_region
          %189 = dma.done %s182, 512
        $region32: #{tpu_custom_call.1} parent=27 // pred_fallthru
          _
        %s190 = sand.u32 %s72, 1
        %s191 = scalar_lea.sflag [#allocation7], %s190
        %s192 = sand.u32 %s72, 1
        %s193 = smul.addr %s192, 32
        %s194 = scalar_lea.vmem [#allocation6], %s193
        // Predicated region
        $region33: #{tpu_custom_call.1} parent=27 // pred_check
          %p195 = pneg %p85
        $region34: #{tpu_custom_call.1} parent=27 // pred_check_branch
          %197 = sbr.rel (%p195) target = $region36
        $region35: #{tpu_custom_call.1} parent=27 // pred_region
          %198 = dma.done %s191, 512
        $region36: #{tpu_custom_call.1} parent=27 // pred_fallthru
          _
        %s199 = sand.u32 %s44, 1
        %s200 = scalar_lea.sflag [#allocation4], %s199
        %s201 = sand.u32 %s44, 1
        %s202 = smul.addr %s201, 32
        %s203 = scalar_lea.vmem [#allocation3], %s202
        %p204 = pneg %p57
        %p205 = pneg %p54
        %s206 = sand.u32 %s72, 1
        %s207 = scalar_lea.sflag [#allocation7], %s206
        %s208 = sand.u32 %s72, 1
        %s209 = smul.addr %s208, 32
        %s210 = scalar_lea.vmem [#allocation6], %s209
        %p211 = pneg %p85
        %p212 = pneg %p82
        %p213 = pneg %p111
        %p214 = pneg %p108
        %s215 = sand.u32 %s98, 1
        %s216 = scalar_lea.sflag [#allocation5], %s215
        %s217 = sand.u32 %s98, 1
        %s218 = smul.addr %s217, 8
        %s219 = scalar_lea.vmem [#allocation8], %s218
        %s220 = sadd.s32 %s26, %s27
        %s221 = smul.u32 4, %s220
        %s222 = sadd.s32 %s26, %s27
        %s223 = smul.u32 4, %s222
        %p224 = scmp.eq.s32.totalorder %s27, 0
        // Predicated region
        $region37: #{tpu_custom_call.1} parent=27 // pred_check
          %p225 = pneg %p224
        $region38: #{tpu_custom_call.1} parent=27 // pred_check_branch
          %227 = sbr.rel (%p225) target = $region40
        $region39: #{tpu_custom_call.1} parent=27 // pred_region
          %228 = vst [vmem:[#allocation2] sm:$0xff] 0.0
        $region40: #{tpu_custom_call.1} parent=27 // pred_fallthru
          _
        %v229 = vld [vmem:[%s185] sm:$0xff]
        %v230 = vld [vmem:[%s185 + $0x8] sm:$0xff]
        %v231 = vld [vmem:[%s185 + $0x10] sm:$0xff]
        %v232 = vld [vmem:[%s185 + $0x18] sm:$0xff]
        %v233 = vld [vmem:[%s194] sm:$0xff]
        %v234 = vld [vmem:[%s194 + $0x8] sm:$0xff]
        %v235 = vld [vmem:[%s194 + $0x10] sm:$0xff]
        %v236 = vld [vmem:[%s194 + $0x18] sm:$0xff]
        %v237 = vsub.f32 %v229, %v233
        %v238 = vsub.f32 %v230, %v234
        %v239 = vsub.f32 %v231, %v235
        %v240 = vsub.f32 %v232, %v236
        %v241 = vmul.f32 %v237, %v237
        %v242 = vmul.f32 %v238, %v238
        %v243 = vmul.f32 %v239, %v239
        %v244 = vmul.f32 %v240, %v240
        %v245 = vld [vmem:[#allocation2] sm:$0xff]
        %v246 = vadd.f32 %v241, %v242
        %v247 = vadd.f32 %v246, %v243
        %v248 = vadd.f32 %v247, %v244
        %v249 = vadd.f32 %v245, %v248
        %250 = vst [vmem:[#allocation2] sm:$0xff] %v249
        // Predicated region
        $region41: #{tpu_custom_call.1} parent=27 // pred_check
          %p251 = pneg %p224
        $region42: #{tpu_custom_call.1} parent=27 // pred_check_branch
          %253 = sbr.rel (%p251) target = $region44
        $region43: #{tpu_custom_call.1} parent=27 // pred_region
          %v254 = vld [vmem:[#allocation2] sm:$0xff]
          %v255 = vmul.f32 %v254, 0.00024414063
          %256 = vst [vmem:[%s219] sm:$0xff] %v255
        $region44: #{tpu_custom_call.1} parent=27 // pred_fallthru
          _
        %s257 = sand.u32 %s98, 1
        %s258 = scalar_lea.sflag [#allocation5], %s257
        %s259 = sand.u32 %s98, 1
        %s260 = smul.addr %s259, 8
        %s261 = scalar_lea.vmem [#allocation8], %s260
        // Predicated region
        $region45: #{tpu_custom_call.1} parent=27 // pred_check
          %p262 = pneg %p108
        $region46: #{tpu_custom_call.1} parent=27 // pred_check_branch
          %264 = sbr.rel (%p262) target = $region48
        $region47: #{tpu_custom_call.1} parent=27 // pred_region
          %s266 = ssub.s32 128, 128
          %267 = vsyncadd %s258, %s266
          %s268 = smul.addr %s26, 128
          %s269 = scalar_lea.hbm %s2, %s268
          %s271 = sshll.u32 %s261, 4
          %s272 = int_to_ptr.vmem [resolvable:$true] %s271
          %274 = dma.vmem_to_hbm [thread:$0]  %s272, 128, %s269, %s258
        $region48: #{tpu_custom_call.1} parent=27 // pred_fallthru
          _
      $region28: #{tpu_custom_call.1} parent=5 // pred_fallthru
        _
      %p275 = scmp.le.s32.totalorder 2, %s17
      // Predicated region
      $region49: #{tpu_custom_call.1} parent=5 // pred_check
        %p276 = pneg %p275
      $region50: #{tpu_custom_call.1} parent=5 // pred_check_branch
        %278 = sbr.rel (%p276) target = $region52
      $region51: #{tpu_custom_call.1} parent=5 // pred_region
        %s279 = ssub.s32 %s17, 2
        // Predicated region
        $region53: #{tpu_custom_call.1} parent=51 // pred_check
          %p280 = pneg %p114
        $region54: #{tpu_custom_call.1} parent=51 // pred_check_branch
          %282 = sbr.rel (%p280) target = $region56
        $region55: #{tpu_custom_call.1} parent=51 // pred_region
          %s283 = sand.u32 %s99, 1
          %s284 = scalar_lea.sflag [#allocation5], %s283
          %s285 = sand.u32 %s99, 1
          %s286 = smul.addr %s285, 8
          %s287 = scalar_lea.vmem [#allocation8], %s286
          %288 = dma.done %s284, 128
        $region56: #{tpu_custom_call.1} parent=51 // pred_fallthru
          _
      $region52: #{tpu_custom_call.1} parent=5 // pred_fallthru
        _
    $region6: #{tpu_custom_call.1} parent=1 // loop_footer
      %s21 = sadd.s32 1, %s17
    $region7: #{tpu_custom_call.1} parent=1 // loop_footer_branch
      %16 = sbr.rel target = $region3
    $region8: #{tpu_custom_call.1} parent=1 // loop_exit
      _
    %289 = vsyncpa [#allocation4], 1
    %s290 = scalar_lea.sflag [#allocation4], 1
    %291 = vsyncpa %s290, 1
    %292 = vsyncpa [#allocation7], 1
    %s293 = scalar_lea.sflag [#allocation7], 1
    %294 = vsyncpa %s293, 1
    %295 = vsyncpa [#allocation5], 1
    %s296 = scalar_lea.sflag [#allocation5], 1
    %297 = vsyncpa %s296, 1

</llo_original>
